<compile_context>
chip_gen: v7x
topology: tpu7x:2x2x1
jax: 0.10.0
libtpu: 0.0.40
codegen_flags: <defaults>
</compile_context>

<pallas_src>
import functools

import jax
import jax.numpy as jnp
from jax import lax
from jax.experimental import pallas as pl
from jax.experimental.pallas import tpu as pltpu


def _sdpa_kernel(q_ref, k_ref, v_ref, mask_ref, ctx_ref, prob_ref, *, scale):
    # Blocks: q (G, TQ, D) bf16, k/v (G, S, D) bf16, mask (Gm, TQ, S) int8, Gm in {1, G}.
    q = q_ref[...]
    k = k_ref[...]
    v = v_ref[...]
    mask = mask_ref[...]

    # scores[g, q, s] = sum_d q[g, q, d] * k[g, s, d]   (batched over g, no K transpose)
    scores = lax.dot_general(
        q, k,
        dimension_numbers=(((2,), (2,)), ((0,), (0,))),
        preferred_element_type=jnp.float32,
    )
    # Scale in f32 (matches torch matmul(...).mul_(scale); avoids bf16-quantized scale).
    scores = scores * jnp.float32(scale)

    # masked_fill_(attn_mask, -1e9); mask broadcasts over the head-group axis if shared.
    scores = jnp.where(mask != 0, jnp.float32(-1e9), scores)

    # Numerically-stable softmax over the key axis; all stats in f32 (also the fast
    # path on v5e, which has no bf16 VPU/EUP).
    m = jnp.max(scores, axis=-1, keepdims=True)
    e = jnp.exp(scores - m)
    denom = jnp.sum(e, axis=-1, keepdims=True)
    prob = e * pl.reciprocal(denom, approx=True)   # EUP divide, off the VPU critical slot

    # TODO(synk): nn.Dropout(p=0.1) is identity in eval mode; training-mode dropout
    # (pltpu.prng_seed / prng_random_bits) is not applied here.

    prob_ref[...] = prob.astype(prob_ref.dtype)

    # context[g, q, d] = sum_s prob[g, q, s] * v[g, s, d]
    ctx = lax.dot_general(
        prob.astype(v.dtype), v,
        dimension_numbers=(((2,), (1,)), ((0,), (0,))),
        preferred_element_type=jnp.float32,
    )
    ctx_ref[...] = ctx.astype(ctx_ref.dtype)


def _divisors(n):
    out = set()
    i = 1
    while i * i <= n:
        if n % i == 0:
            out.add(i)
            out.add(n // i)
        i += 1
    return sorted(out)


def _vmem_capacity_bytes():
    try:
        return int(pltpu.get_tpu_info().vmem_capacity_bytes)
    except Exception:
        return 64 << 20   # most conservative (v7x per-TC VMEM)


def scaled_dot_product_attention(q, k, v, attn_mask, *, d_head=None,
                                 prob_dtype=jnp.float32):
    """q, k, v: (B, H, S, D); attn_mask: bool/int, (S,S)/(1,1,S,S)/(B,H,S,S)-broadcastable.

    Nonzero mask entries are masked out (filled with -1e9 before softmax).
    Dropout from the PyTorch module is an eval-mode identity and is not applied.
    """
    B, H, S, D = q.shape
    BH = B * H
    if d_head is None:
        d_head = D
    scale = 1.0 / (d_head ** 0.5)
    out_dtype = q.dtype
    out_isz = jnp.dtype(out_dtype).itemsize
    prob_isz = jnp.dtype(prob_dtype).itemsize

    # --- Mask: keep broadcast form when possible (no BH*S^2 materialization / DMA). ---
    mask = jnp.asarray(attn_mask)
    if mask.ndim == 2 and mask.shape == (S, S):
        mask_shared = True
    elif mask.ndim == 4 and mask.shape[0] == 1 and mask.shape[1] == 1:
        mask_shared = True
        mask = mask[0, 0]
    else:
        mask_shared = False
        mask = jnp.broadcast_to(mask, (B, H, S, S))
    if mask_shared:
        mask_arr = mask.astype(jnp.int8).reshape(1, S, S)
    else:
        mask_arr = mask.astype(jnp.int8).reshape(BH, S, S)

    # bf16 matmul inputs (f32 accumulation in-kernel); fold (B, H).
    q3 = q.astype(jnp.bfloat16).reshape(BH, S, D)
    k3 = k.astype(jnp.bfloat16).reshape(BH, S, D)
    v3 = v.astype(jnp.bfloat16).reshape(BH, S, D)

    # --- Per-generation VMEM budget drives (G, TQ). ---
    capacity = _vmem_capacity_bytes()
    budget = int(0.72 * capacity)          # ~46 MiB on v7x, ~92 MiB on v5e/v6e

    def block_bytes(G, TQ, gm):
        q_b = 2 * G * TQ * D * 2                  # Q bf16, double-buffered
        kv_b = 2 * 2 * G * S * D * 2              # K + V bf16, double-buffered
        mask_b = 2 * gm * TQ * S * 1              # mask int8, double-buffered
        ctx_b = 2 * G * TQ * D * out_isz          # context out
        prob_b = 2 * G * TQ * S * prob_isz        # attn_prob out
        interm = 3 * G * TQ * S * 4               # scores / e / prob f32 intermediates
        return q_b + kv_b + mask_b + ctx_b + prob_b + interm

    # Query-tile candidates: multiple-of-8 divisors of S (the (8,128) block rule), plus
    # S itself; TQ > 1024 buys no extra roofline, it only eats VMEM.
    cands = sorted({d for d in _divisors(S) if d % 8 == 0} | {S})
    cand_capped = [c for c in cands if c <= 1024] or cands
    TQ = None
    for c in sorted(cand_capped, reverse=True):
        if block_bytes(1, c, 1) <= budget:
            TQ = c
            break
    if TQ is None:
        # Pathological (e.g. huge S with no multiple-of-8 divisor): smallest legal tile.
        TQ = min(cand_capped)

    # Head-group size: grouping heads does not improve MXU shape (the batched dot is G
    # independent per-head matmuls) -- it only amortizes the ~0.35us grid-step overhead
    # while multiplying every buffer by G.  Grow G only for tiny per-step tiles, keep
    # >=2 blocks on the head-group axis so both v7x TensorCores get work, and stay
    # inside the VMEM budget.
    G = 1
    if TQ * S * 4 <= (256 << 10):                 # per-head f32 score tile <= 256 KiB
        for cand in _divisors(BH):
            if cand == 1 or cand > 8:
                continue
            if BH >= 2 and BH // cand < 2:
                continue
            gm = 1 if mask_shared else cand
            if block_bytes(cand, TQ, gm) <= budget:
                G = cand

    gm = 1 if mask_shared else G
    grid = (BH // G, S // TQ)

    # Explicit VMEM request: block footprint + ~30% headroom, capped below physical
    # capacity (leave ~10% for Mosaic internal scratch).
    need = block_bytes(G, TQ, gm)
    vmem_limit = min(max(int(1.3 * need), 16 << 20), int(0.90 * capacity))

    if mask_shared:
        mask_spec = pl.BlockSpec((1, TQ, S), lambda g, qi: (0, qi, 0))
    else:
        mask_spec = pl.BlockSpec((G, TQ, S), lambda g, qi: (g, qi, 0))

    kernel = functools.partial(_sdpa_kernel, scale=scale)

    ctx3, prob3 = pl.pallas_call(
        kernel,
        out_shape=(
            jax.ShapeDtypeStruct((BH, S, D), out_dtype),
            jax.ShapeDtypeStruct((BH, S, S), prob_dtype),
        ),
        grid_spec=pltpu.PrefetchScalarGridSpec(
            num_scalar_prefetch=0,
            grid=grid,
            in_specs=[
                pl.BlockSpec((G, TQ, D), lambda g, qi: (g, qi, 0)),   # Q
                pl.BlockSpec((G, S, D), lambda g, qi: (g, 0, 0)),     # K (resident over qi)
                pl.BlockSpec((G, S, D), lambda g, qi: (g, 0, 0)),     # V (resident over qi)
                mask_spec,                                            # mask (int8)
            ],
            out_specs=(
                pl.BlockSpec((G, TQ, D), lambda g, qi: (g, qi, 0)),   # context
                pl.BlockSpec((G, TQ, S), lambda g, qi: (g, qi, 0)),   # attn_prob
            ),
        ),
        compiler_params=pltpu.CompilerParams(
            # Megacore split on the head-group axis only; the query-tile axis stays on
            # one core so the resident K/V blocks are not re-DMA'd per TensorCore.
            dimension_semantics=("parallel", "arbitrary"),
            vmem_limit_bytes=vmem_limit,
        ),
    )(q3, k3, v3, mask_arr)

    return ctx3.reshape(B, H, S, D), prob3.reshape(B, H, S, S)


def _reference(q, k, v, attn_mask, d_head):
    scale = 1.0 / (d_head ** 0.5)
    scores = jnp.einsum("bhqd,bhkd->bhqk", q, k) * scale
    scores = jnp.where(attn_mask, -1e9, scores)
    prob = jax.nn.softmax(scores, axis=-1)
    ctx = jnp.einsum("bhqk,bhkd->bhqd", prob, v)
    return ctx, prob


if __name__ == "__main__":
    # Small shapes consistent with the module config: n_head=4, d_head=64.
    B, H, S, D = 2, 4, 8, 64
    key = jax.random.PRNGKey(0)
    kq, kk, kv = jax.random.split(key, 3)
    Q = jax.random.normal(kq, (B, H, S, D), dtype=jnp.float32)
    K = jax.random.normal(kk, (B, H, S, D), dtype=jnp.float32)
    V = jax.random.normal(kv, (B, H, S, D), dtype=jnp.float32)

    # Causal-style decoder mask (True == masked).
    causal = jnp.triu(jnp.ones((S, S), dtype=bool), k=1)

    # Path 1: broadcast (1,1,S,S) mask -> compact shared-mask path (no BH*S^2 mask DMA).
    ctx1, prob1 = scaled_dot_product_attention(Q, K, V, causal[None, None], d_head=D)
    # Path 2: fully materialized per-(batch, head) mask -> general fallback path.
    mask_full = jnp.broadcast_to(causal, (B, H, S, S))
    ctx2, prob2 = scaled_dot_product_attention(Q, K, V, mask_full, d_head=D)
    jax.block_until_ready((ctx1, prob1, ctx2, prob2))

    ctx_ref, prob_ref = _reference(Q, K, V, mask_full, D)
    # bf16 matmul inputs (f32 accumulation) -> loosened tolerances vs pure-f32 reference.
    for ctx, prob in ((ctx1, prob1), (ctx2, prob2)):
        assert jnp.allclose(ctx, ctx_ref, atol=5e-2, rtol=5e-2), "context mismatch"
        assert jnp.allclose(prob, prob_ref, atol=2e-2, rtol=2e-2), "attn_prob mismatch"

    print("KERNEL_OK")
</pallas_src>

<mosaic_0001>
module attributes {stable_mosaic.version = 11 : i64} {
  func.func @_sdpa_kernel(%arg0: i32, %arg1: i32, %arg2: memref<4x8x64xbf16, #tpu.memory_space<vmem>>, %arg3: memref<4x8x64xbf16, #tpu.memory_space<vmem>>, %arg4: memref<4x8x64xbf16, #tpu.memory_space<vmem>>, %arg5: memref<1x8x8xi8, #tpu.memory_space<vmem>>, %arg6: memref<4x8x64xf32, #tpu.memory_space<vmem>>, %arg7: memref<4x8x8xf32, #tpu.memory_space<vmem>>) attributes {dimension_semantics = [#tpu.dimension_semantics<parallel>, #tpu.dimension_semantics<arbitrary>], iteration_bounds = array<i64: 2, 1>, scalar_prefetch = 0 : i64, scratch_operands = 0 : i64, tpu.core_type = #tpu.core_type<tc>, window_params = [{transform_indices = @transform_0, window_bounds = array<i64: 4, 8, 64>}, {transform_indices = @transform_1, window_bounds = array<i64: 4, 8, 64>}, {transform_indices = @transform_2, window_bounds = array<i64: 4, 8, 64>}, {transform_indices = @transform_3, window_bounds = array<i64: 1, 8, 8>}, {transform_indices = @transform_4, window_bounds = array<i64: 4, 8, 64>}, {transform_indices = @transform_5, window_bounds = array<i64: 4, 8, 8>}]} {
    %c0 = arith.constant 0 : index
    %c0_0 = arith.constant 0 : index
    %c0_1 = arith.constant 0 : index
    %0 = vector.load %arg2[%c0, %c0_0, %c0_1] : memref<4x8x64xbf16, #tpu.memory_space<vmem>>, vector<4x8x64xbf16>
    %c0_2 = arith.constant 0 : index
    %c0_3 = arith.constant 0 : index
    %c0_4 = arith.constant 0 : index
    %1 = vector.load %arg3[%c0_2, %c0_3, %c0_4] : memref<4x8x64xbf16, #tpu.memory_space<vmem>>, vector<4x8x64xbf16>
    %c0_5 = arith.constant 0 : index
    %c0_6 = arith.constant 0 : index
    %c0_7 = arith.constant 0 : index
    %2 = vector.load %arg4[%c0_5, %c0_6, %c0_7] : memref<4x8x64xbf16, #tpu.memory_space<vmem>>, vector<4x8x64xbf16>
    %c0_8 = arith.constant 0 : index
    %c0_9 = arith.constant 0 : index
    %c0_10 = arith.constant 0 : index
    %3 = vector.load %arg5[%c0_8, %c0_9, %c0_10] : memref<1x8x8xi8, #tpu.memory_space<vmem>>, vector<1x8x8xi8>
    %cst = arith.constant dense<0.000000e+00> : vector<4x8x8xf32>
    %4 = tpu.matmul %0, %1, %cst {dimension_numbers = #tpu.dot_dimension_numbers<[2], [2], [1], [1], [0, 0, 0, 1, 1, 1], [0], [0]>} : vector<4x8x64xbf16>, vector<4x8x64xbf16>, vector<4x8x8xf32> -> vector<4x8x8xf32>
    %cst_11 = arith.constant 1.250000e-01 : f32
    %5 = vector.broadcast %cst_11 : f32 to vector<4x8x8xf32>
    %6 = arith.mulf %4, %5 : vector<4x8x8xf32>
    %c0_i8 = arith.constant 0 : i8
    %7 = vector.broadcast %c0_i8 : i8 to vector<1x8x8xi8>
    %8 = arith.cmpi ne, %3, %7 : vector<1x8x8xi8>
    %cst_12 = arith.constant -1.000000e+09 : f32
    %9 = vector.shape_cast %8 : vector<1x8x8xi1> to vector<1x8x8xi1>
    %10 = vector.broadcast %9 : vector<1x8x8xi1> to vector<4x8x8xi1>
    %11 = vector.broadcast %cst_12 : f32 to vector<4x8x8xf32>
    %12 = arith.select %10, %11, %6 : vector<4x8x8xi1>, vector<4x8x8xf32>
    %cst_13 = arith.constant dense<0xFF800000> : vector<4x8xf32>
    %13 = vector.multi_reduction <maximumf>, %12, %cst_13 [2] : vector<4x8x8xf32> to vector<4x8xf32>
    %14 = vector.shape_cast %13 : vector<4x8xf32> to vector<4x8x1xf32>
    %15 = vector.broadcast %14 : vector<4x8x1xf32> to vector<4x8x8xf32>
    %16 = arith.subf %12, %15 : vector<4x8x8xf32>
    %17 = math.exp %16 : vector<4x8x8xf32>
    %cst_14 = arith.constant dense<0.000000e+00> : vector<4x8xf32>
    %18 = vector.multi_reduction <add>, %17, %cst_14 [2] : vector<4x8x8xf32> to vector<4x8xf32>
    %19 = vector.shape_cast %18 : vector<4x8xf32> to vector<4x8x1xf32>
    %20 = tpu.reciprocal %19 {approx = true} : vector<4x8x1xf32> -> vector<4x8x1xf32>
    %21 = vector.broadcast %20 : vector<4x8x1xf32> to vector<4x8x8xf32>
    %22 = arith.mulf %17, %21 : vector<4x8x8xf32>
    %c0_15 = arith.constant 0 : index
    %c0_16 = arith.constant 0 : index
    %c0_17 = arith.constant 0 : index
    %23 = vector.load %arg7[%c0_15, %c0_16, %c0_17] : memref<4x8x8xf32, #tpu.memory_space<vmem>>, vector<4x8x8xf32>
    tpu.vector_store %arg7[%c0_15, %c0_16, %c0_17], %22 {strides = array<i32>} : memref<4x8x8xf32, #tpu.memory_space<vmem>>, vector<4x8x8xf32>,
    %24 = arith.truncf %22 : vector<4x8x8xf32> to vector<4x8x8xbf16>
    %cst_18 = arith.constant dense<0.000000e+00> : vector<4x8x64xf32>
    %25 = tpu.matmul %24, %2, %cst_18 {dimension_numbers = #tpu.dot_dimension_numbers<[2], [1], [1], [2], [0, 0, 0, 1, 1, 2], [0], [0]>} : vector<4x8x8xbf16>, vector<4x8x64xbf16>, vector<4x8x64xf32> -> vector<4x8x64xf32>
    %c0_19 = arith.constant 0 : index
    %c0_20 = arith.constant 0 : index
    %c0_21 = arith.constant 0 : index
    %26 = vector.load %arg6[%c0_19, %c0_20, %c0_21] : memref<4x8x64xf32, #tpu.memory_space<vmem>>, vector<4x8x64xf32>
    tpu.vector_store %arg6[%c0_19, %c0_20, %c0_21], %25 {strides = array<i32>} : memref<4x8x64xf32, #tpu.memory_space<vmem>>, vector<4x8x64xf32>,
    return
  }
  func.func @transform_0(%arg0: i32, %arg1: i32) -> (i32, i32, i32) {
    %c0_i32 = arith.constant 0 : i32
    %c0_i32_0 = arith.constant 0 : i32
    return %arg0, %arg1, %c0_i32 : i32, i32, i32
  }
  func.func @transform_1(%arg0: i32, %arg1: i32) -> (i32, i32, i32) {
    %c0_i32 = arith.constant 0 : i32
    %c0_i32_0 = arith.constant 0 : i32
    %c0_i32_1 = arith.constant 0 : i32
    return %arg0, %c0_i32, %c0_i32_0 : i32, i32, i32
  }
  func.func @transform_2(%arg0: i32, %arg1: i32) -> (i32, i32, i32) {
    %c0_i32 = arith.constant 0 : i32
    %c0_i32_0 = arith.constant 0 : i32
    %c0_i32_1 = arith.constant 0 : i32
    return %arg0, %c0_i32, %c0_i32_0 : i32, i32, i32
  }
  func.func @transform_3(%arg0: i32, %arg1: i32) -> (i32, i32, i32) {
    %c0_i32 = arith.constant 0 : i32
    %c0_i32_0 = arith.constant 0 : i32
    %c0_i32_1 = arith.constant 0 : i32
    return %c0_i32, %arg1, %c0_i32_0 : i32, i32, i32
  }
  func.func @transform_4(%arg0: i32, %arg1: i32) -> (i32, i32, i32) {
    %c0_i32 = arith.constant 0 : i32
    %c0_i32_0 = arith.constant 0 : i32
    return %arg0, %arg1, %c0_i32 : i32, i32, i32
  }
  func.func @transform_5(%arg0: i32, %arg1: i32) -> (i32, i32, i32) {
    %c0_i32 = arith.constant 0 : i32
    %c0_i32_0 = arith.constant 0 : i32
    return %arg0, %arg1, %c0_i32 : i32, i32, i32
  }
}

</mosaic_0001>

<llo_original>
// kernel: tpu_custom_call.1
$region0: #{tpu_custom_call.1}
  #allocation0 [shape = 'u32[]', space=smem, size = 0x4, offset = 0x4, fixed_abs, tag = 'smem constant byte address 0x4 - core index']
  #allocation1 [shape = 'u32[144,128]{1,0:T(1,128)}', space=vmem, size = 0x12000, scoped, tag = 'internal scratch']
  %s0 = inlined_call_operand.hbm [shape: bf16[8,8,64], index: 0, kind: input, shape index: {}]
  %s1 = inlined_call_operand.hbm [shape: bf16[8,8,64], index: 1, kind: input, shape index: {}]
  %s2 = inlined_call_operand.hbm [shape: bf16[8,8,64], index: 2, kind: input, shape index: {}]
  %s3 = inlined_call_operand.vmem [shape: s8[1,8,8], index: 3, kind: input, shape index: {}]
  %s4 = inlined_call_operand.hbm [shape: f32[8,8,64], index: 4, kind: output, shape index: {0}]
  %s5 = inlined_call_operand.hbm [shape: f32[8,8,8], index: 5, kind: output, shape index: {1}]
  %6 = xla_tuple %s4, %s5
  %s7 = sld [smem:[#allocation0]]
  $region69: #{tpu_custom_call.1} parent=0
    _
  %s9 = ssub.s32 1, %s7
  %s10 = scalar_select 0, %s9, %s7
  $region1: #{tpu_custom_call.1} parent=0
    #allocation2 [shape = 'u8[16384]{0}', space=vmem, size = 0x4000, scoped, tag = 'input window, operand 0']
    #allocation3 [shape = 's32[2]{0}', space=sflag, size = 0x8, scoped, tag = 'scoped memory for tpu_custom_call.1']
    #allocation4 [shape = 's32[2]{0}', space=sflag, size = 0x8, scoped, tag = 'scoped memory for tpu_custom_call.1']
    #allocation5 [shape = 'u8[16384]{0}', space=vmem, size = 0x4000, scoped, tag = 'input window, operand 1']
    #allocation6 [shape = 's32[2]{0}', space=sflag, size = 0x8, scoped, tag = 'scoped memory for tpu_custom_call.1']
    #allocation7 [shape = 'u8[16384]{0}', space=vmem, size = 0x4000, scoped, tag = 'input window, operand 2']
    #allocation8 [shape = 'u8[32768]{0}', space=vmem, size = 0x8000, scoped, tag = 'output window, operand 0']
    #allocation9 [shape = 'u8[32768]{0}', space=vmem, size = 0x8000, scoped, tag = 'output window, operand 1']
    #allocation10 [shape = 's32[2]{0}', space=sflag, size = 0x8, scoped, tag = 'scoped memory for tpu_custom_call.1']
    %11 = vsyncpa [#allocation3], 0
    %s12 = scalar_lea.sflag [#allocation3], 1
    %13 = vsyncpa %s12, 0
    %14 = vsyncpa [#allocation6], 0
    %s15 = scalar_lea.sflag [#allocation6], 1
    %16 = vsyncpa %s15, 0
    %17 = vsyncpa [#allocation4], 0
    %s18 = scalar_lea.sflag [#allocation4], 1
    %19 = vsyncpa %s18, 0
    %20 = vsyncpa [#allocation10], 0
    %s21 = scalar_lea.sflag [#allocation10], 1
    %22 = vsyncpa %s21, 0
    loop: start=0, step=1, limit=4
    $region2: #{tpu_custom_call.1} parent=1 // loop_pre_header
      _
    $region3: #{tpu_custom_call.1} parent=1 // loop_header
      %s24 = sphi 0, %s28
      %p25 = scmp.ge.s32.totalorder %s24, 4
      %s31 = sphi 0, %s43
      %s32 = sphi 0, %s39
      %s33 = sphi 0, %s31
      %s34 = sphi 0, %s32
      %s35 = sphi 0, %s33
      %s36 = sphi 0, %s34
      %s48 = sphi 0, %s50
      %s51 = sphi 0, %s48
      %s52 = sphi 0, %s51
      %s68 = sphi 0, %s52
      %s74 = sphi 0, %s76
      %s77 = sphi 0, %s74
      %s78 = sphi 0, %s77
      %s94 = sphi 0, %s78
      %s100 = sphi 0, %s102
      %s103 = sphi 0, %s100
      %s104 = sphi 0, %s103
      %s120 = sphi 0, %s104
      %s126 = sphi 0, %s128
      %s129 = sphi 0, %s126
      %s130 = sphi 0, %s129
      %s146 = sphi 0, %s130
      %s154 = sphi 0, %s156
      %s157 = sphi 0, %s154
      %s158 = sphi 0, %s157
      %s174 = sphi 0, %s158
      %s182 = sphi 0, %s184
      %s185 = sphi 0, %s182
      %s186 = sphi 0, %s185
      %s202 = sphi 0, %s186
    $region4: #{tpu_custom_call.1} parent=1 // loop_header_branch
      %27 = sbr.rel (%p25) target = $region8
    $region5: #{tpu_custom_call.1} parent=1 // loop_body
      %s29 = ssub.s32 %s24, 1
      %s30 = ssub.s32 %s24, 2
      %s37 = sadd.s32 1, %s32
      %p38 = scmp.ge.s32.totalorder %s37, 1
      %s39 = scalar_select %p38, 0, %s37
      %s40 = sadd.s32 1, %s31
      %s41 = scalar_select %p38, %s40, %s31
      %p42 = scmp.ge.s32.totalorder %s41, 2
      %s43 = scalar_select %p42, 0, %s41
      %s44 = ssub.s32 %s31, %s43
      %s45 = ssub.s32 %s32, %s39
      %s46 = sor.u32 %s44, %s45
      %p47 = scmp.eq.s32.totalorder %s46, 0
      %s49 = sadd.s32 %s48, 1
      %s50 = scalar_select %p47, %s48, %s49
      %p53 = pneg %p47
      %p54 = scmp.eq.s32.totalorder %s24, 1
      %p55 = por %p53, %p54
      %p56 = scmp.ne.s32.totalorder %s48, %s51
      %p57 = scmp.eq.s32.totalorder %s24, 0
      %p58 = por %p56, %p57
      %p59 = scmp.ne.s32.totalorder %s48, %s51
      %p60 = scmp.eq.s32.totalorder %s29, 1
      %p61 = por %p59, %p60
      %p62 = scmp.ne.s32.totalorder %s51, %s52
      %p63 = scmp.eq.s32.totalorder %s29, 0
      %p64 = por %p62, %p63
      %p65 = scmp.ne.s32.totalorder %s51, %s52
      %p66 = scmp.eq.s32.totalorder %s30, 1
      %p67 = por %p65, %p66
      %p69 = scmp.ne.s32.totalorder %s52, %s68
      %p70 = scmp.eq.s32.totalorder %s30, 0
      %p71 = por %p69, %p70
      %s72 = ssub.s32 %s31, %s43
      %p73 = scmp.eq.s32.totalorder %s72, 0
      %s75 = sadd.s32 %s74, 1
      %s76 = scalar_select %p73, %s74, %s75
      %p79 = pneg %p73
      %p80 = scmp.eq.s32.totalorder %s24, 1
      %p81 = por %p79, %p80
      %p82 = scmp.ne.s32.totalorder %s74, %s77
      %p83 = scmp.eq.s32.totalorder %s24, 0
      %p84 = por %p82, %p83
      %p85 = scmp.ne.s32.totalorder %s74, %s77
      %p86 = scmp.eq.s32.totalorder %s29, 1
      %p87 = por %p85, %p86
      %p88 = scmp.ne.s32.totalorder %s77, %s78
      %p89 = scmp.eq.s32.totalorder %s29, 0
      %p90 = por %p88, %p89
      %p91 = scmp.ne.s32.totalorder %s77, %s78
      %p92 = scmp.eq.s32.totalorder %s30, 1
      %p93 = por %p91, %p92
      %p95 = scmp.ne.s32.totalorder %s78, %s94
      %p96 = scmp.eq.s32.totalorder %s30, 0
      %p97 = por %p95, %p96
      %s98 = ssub.s32 %s31, %s43
      %p99 = scmp.eq.s32.totalorder %s98, 0
      %s101 = sadd.s32 %s100, 1
      %s102 = scalar_select %p99, %s100, %s101
      %p105 = pneg %p99
      %p106 = scmp.eq.s32.totalorder %s24, 1
      %p107 = por %p105, %p106
      %p108 = scmp.ne.s32.totalorder %s100, %s103
      %p109 = scmp.eq.s32.totalorder %s24, 0
      %p110 = por %p108, %p109
      %p111 = scmp.ne.s32.totalorder %s100, %s103
      %p112 = scmp.eq.s32.totalorder %s29, 1
      %p113 = por %p111, %p112
      %p114 = scmp.ne.s32.totalorder %s103, %s104
      %p115 = scmp.eq.s32.totalorder %s29, 0
      %p116 = por %p114, %p115
      %p117 = scmp.ne.s32.totalorder %s103, %s104
      %p118 = scmp.eq.s32.totalorder %s30, 1
      %p119 = por %p117, %p118
      %p121 = scmp.ne.s32.totalorder %s104, %s120
      %p122 = scmp.eq.s32.totalorder %s30, 0
      %p123 = por %p121, %p122
      %s124 = ssub.s32 %s32, %s39
      %p125 = scmp.eq.s32.totalorder %s124, 0
      %s127 = sadd.s32 %s126, 1
      %s128 = scalar_select %p125, %s126, %s127
      %p131 = pneg %p125
      %p132 = scmp.eq.s32.totalorder %s24, 1
      %p133 = por %p131, %p132
      %p134 = scmp.ne.s32.totalorder %s126, %s129
      %p135 = scmp.eq.s32.totalorder %s24, 0
      %p136 = por %p134, %p135
      %p137 = scmp.ne.s32.totalorder %s126, %s129
      %p138 = scmp.eq.s32.totalorder %s29, 1
      %p139 = por %p137, %p138
      %p140 = scmp.ne.s32.totalorder %s129, %s130
      %p141 = scmp.eq.s32.totalorder %s29, 0
      %p142 = por %p140, %p141
      %p143 = scmp.ne.s32.totalorder %s129, %s130
      %p144 = scmp.eq.s32.totalorder %s30, 1
      %p145 = por %p143, %p144
      %p147 = scmp.ne.s32.totalorder %s130, %s146
      %p148 = scmp.eq.s32.totalorder %s30, 0
      %p149 = por %p147, %p148
      %s150 = ssub.s32 %s31, %s43
      %s151 = ssub.s32 %s32, %s39
      %s152 = sor.u32 %s150, %s151
      %p153 = scmp.eq.s32.totalorder %s152, 0
      %s155 = sadd.s32 %s154, 1
      %s156 = scalar_select %p153, %s154, %s155
      %p159 = pneg %p153
      %p160 = scmp.eq.s32.totalorder %s24, 1
      %p161 = por %p159, %p160
      %p162 = scmp.ne.s32.totalorder %s154, %s157
      %p163 = scmp.eq.s32.totalorder %s24, 0
      %p164 = por %p162, %p163
      %p165 = scmp.ne.s32.totalorder %s154, %s157
      %p166 = scmp.eq.s32.totalorder %s29, 1
      %p167 = por %p165, %p166
      %p168 = scmp.ne.s32.totalorder %s157, %s158
      %p169 = scmp.eq.s32.totalorder %s29, 0
      %p170 = por %p168, %p169
      %p171 = scmp.ne.s32.totalorder %s157, %s158
      %p172 = scmp.eq.s32.totalorder %s30, 1
      %p173 = por %p171, %p172
      %p175 = scmp.ne.s32.totalorder %s158, %s174
      %p176 = scmp.eq.s32.totalorder %s30, 0
      %p177 = por %p175, %p176
      %s178 = ssub.s32 %s31, %s43
      %s179 = ssub.s32 %s32, %s39
      %s180 = sor.u32 %s178, %s179
      %p181 = scmp.eq.s32.totalorder %s180, 0
      %s183 = sadd.s32 %s182, 1
      %s184 = scalar_select %p181, %s182, %s183
      %p187 = pneg %p181
      %p188 = scmp.eq.s32.totalorder %s24, 1
      %p189 = por %p187, %p188
      %p190 = scmp.ne.s32.totalorder %s182, %s185
      %p191 = scmp.eq.s32.totalorder %s24, 0
      %p192 = por %p190, %p191
      %p193 = scmp.ne.s32.totalorder %s182, %s185
      %p194 = scmp.eq.s32.totalorder %s29, 1
      %p195 = por %p193, %p194
      %p196 = scmp.ne.s32.totalorder %s185, %s186
      %p197 = scmp.eq.s32.totalorder %s29, 0
      %p198 = por %p196, %p197
      %p199 = scmp.ne.s32.totalorder %s185, %s186
      %p200 = scmp.eq.s32.totalorder %s30, 1
      %p201 = por %p199, %p200
      %p203 = scmp.ne.s32.totalorder %s186, %s202
      %p204 = scmp.eq.s32.totalorder %s30, 0
      %p205 = por %p203, %p204
      %p206 = scmp.le.s32.totalorder 1, %s24
      %p207 = scmp.lt.s32.totalorder %s24, 3
      %p208 = pnand %p206, %p207
      %p209 = pneg %p208
      // Predicated region
      $region9: #{tpu_custom_call.1} parent=5 // pred_check
        _
      $region10: #{tpu_custom_call.1} parent=5 // pred_check_branch
        %211 = sbr.rel (%p208) target = $region12
      $region11: #{tpu_custom_call.1} parent=5 // pred_region
        %s212 = ssub.s32 %s24, 1
        // Predicated region
        $region13: #{tpu_custom_call.1} parent=11 // pred_check
          %p213 = pneg %p142
        $region14: #{tpu_custom_call.1} parent=11 // pred_check_branch
          %215 = sbr.rel (%p213) target = $region16
        $region15: #{tpu_custom_call.1} parent=11 // pred_region
          %p216 = scmp.lt.s32.totalorder %s34, 0
          %s217 = scalar_select %p216, %s34, 0
          %s218 = smul.addr %s217, 2
          %s219 = scalar_lea.vmem %s3, %s218
        $region16: #{tpu_custom_call.1} parent=11 // pred_fallthru
          _
      $region12: #{tpu_custom_call.1} parent=5 // pred_fallthru
        _
      %p220 = scmp.lt.s32.totalorder %s24, 2
      // Predicated region
      $region17: #{tpu_custom_call.1} parent=5 // pred_check
        %p221 = pneg %p220
      $region18: #{tpu_custom_call.1} parent=5 // pred_check_branch
        %223 = sbr.rel (%p221) target = $region20
      $region19: #{tpu_custom_call.1} parent=5 // pred_region
        // Predicated region
        $region21: #{tpu_custom_call.1} parent=19 // pred_check
          %p224 = pneg %p58
        $region22: #{tpu_custom_call.1} parent=19 // pred_check_branch
          %226 = sbr.rel (%p224) target = $region24
        $region23: #{tpu_custom_call.1} parent=19 // pred_region
          %s227 = sand.u32 %s48, 1
          %s228 = scalar_lea.sflag [#allocation3], %s227
          %s229 = sand.u32 %s48, 1
          %s230 = smul.addr %s229, 16
          %s231 = scalar_lea.vmem [#allocation2], %s230
          %s232 = smul.u32 4, %s31
          %s234 = ssub.s32 256, 256
          %235 = vsyncadd %s228, %s234
          %s236 = sadd.s32 %s32, %s232
          %s237 = smul.addr %s236, 64
          %s238 = scalar_lea.hbm %s0, %s237
          %s239 = sshll.u32 %s231, 4
          %s240 = int_to_ptr.vmem [resolvable:$true] %s239
          %245 = dma.hbm_to_vmem [thread:$0]  %s238, 256, %s240, %s228, 64, 64, 4
        $region24: #{tpu_custom_call.1} parent=19 // pred_fallthru
          _
        // Predicated region
        $region25: #{tpu_custom_call.1} parent=19 // pred_check
          %p246 = pneg %p84
        $region26: #{tpu_custom_call.1} parent=19 // pred_check_branch
          %248 = sbr.rel (%p246) target = $region28
        $region27: #{tpu_custom_call.1} parent=19 // pred_region
          %s249 = sand.u32 %s24, 1
          %s250 = scalar_lea.sflag [#allocation6], %s249
          %s251 = sand.u32 %s74, 1
          %s252 = smul.addr %s251, 16
          %s253 = scalar_lea.vmem [#allocation5], %s252
          %s254 = smul.u32 4, %s31
          %s256 = ssub.s32 256, 256
          %257 = vsyncadd %s250, %s256
          %s258 = smul.addr %s254, 64
          %s259 = scalar_lea.hbm %s1, %s258
          %s260 = sshll.u32 %s253, 4
          %s261 = int_to_ptr.vmem [resolvable:$true] %s260
          %266 = dma.hbm_to_vmem [thread:$0]  %s259, 256, %s261, %s250, 64, 64, 4
        $region28: #{tpu_custom_call.1} parent=19 // pred_fallthru
          _
        // Predicated region
        $region29: #{tpu_custom_call.1} parent=19 // pred_check
          %p267 = pneg %p110
        $region30: #{tpu_custom_call.1} parent=19 // pred_check_branch
          %269 = sbr.rel (%p267) target = $region32
        $region31: #{tpu_custom_call.1} parent=19 // pred_region
          %s270 = sand.u32 %s24, 1
          %s271 = scalar_lea.sflag [#allocation6], %s270
          %s272 = sand.u32 %s100, 1
          %s273 = smul.addr %s272, 16
          %s274 = scalar_lea.vmem [#allocation7], %s273
          %s275 = smul.u32 4, %s31
          %s277 = ssub.s32 256, 256
          %278 = vsyncadd %s271, %s277
          %s279 = smul.addr %s275, 64
          %s280 = scalar_lea.hbm %s2, %s279
          %s281 = sshll.u32 %s274, 4
          %s282 = int_to_ptr.vmem [resolvable:$true] %s281
          %287 = dma.hbm_to_vmem [thread:$0]  %s280, 256, %s282, %s271, 64, 64, 4
        $region32: #{tpu_custom_call.1} parent=19 // pred_fallthru
          _
      $region20: #{tpu_custom_call.1} parent=5 // pred_fallthru
        _
      %p288 = scmp.le.s32.totalorder 1, %s24
      %p289 = scmp.lt.s32.totalorder %s24, 3
      %p290 = pnand %p288, %p289
      %p291 = pneg %p290
      // Predicated region
      $region33: #{tpu_custom_call.1} parent=5 // pred_check
        _
      $region34: #{tpu_custom_call.1} parent=5 // pred_check_branch
        %293 = sbr.rel (%p290) target = $region36
      $region35: #{tpu_custom_call.1} parent=5 // pred_region
        %s294 = ssub.s32 %s24, 1
        %s295 = sand.u32 %s51, 1
        %s296 = scalar_lea.sflag [#allocation3], %s295
        %s297 = sand.u32 %s51, 1
        %s298 = smul.addr %s297, 16
        %s299 = scalar_lea.vmem [#allocation2], %s298
        // Predicated region
        $region37: #{tpu_custom_call.1} parent=35 // pred_check
          %p300 = pneg %p64
        $region38: #{tpu_custom_call.1} parent=35 // pred_check_branch
          %302 = sbr.rel (%p300) target = $region40
        $region39: #{tpu_custom_call.1} parent=35 // pred_region
          %303 = dma.done %s296, 256
        $region40: #{tpu_custom_call.1} parent=35 // pred_fallthru
          _
        %s304 = sand.u32 %s29, 1
        %s305 = scalar_lea.sflag [#allocation6], %s304
        %s306 = sand.u32 %s77, 1
        %s307 = smul.addr %s306, 16
        %s308 = scalar_lea.vmem [#allocation5], %s307
        // Predicated region
        $region41: #{tpu_custom_call.1} parent=35 // pred_check
          %p309 = pneg %p90
        $region42: #{tpu_custom_call.1} parent=35 // pred_check_branch
          %311 = sbr.rel (%p309) target = $region44
        $region43: #{tpu_custom_call.1} parent=35 // pred_region
          %312 = dma.done %s305, 256
        $region44: #{tpu_custom_call.1} parent=35 // pred_fallthru
          _
        %s313 = sand.u32 %s29, 1
        %s314 = scalar_lea.sflag [#allocation6], %s313
        %s315 = sand.u32 %s103, 1
        %s316 = smul.addr %s315, 16
        %s317 = scalar_lea.vmem [#allocation7], %s316
        // Predicated region
        $region45: #{tpu_custom_call.1} parent=35 // pred_check
          %p318 = pneg %p116
        $region46: #{tpu_custom_call.1} parent=35 // pred_check_branch
          %320 = sbr.rel (%p318) target = $region48
        $region47: #{tpu_custom_call.1} parent=35 // pred_region
          %321 = dma.done %s314, 256
        $region48: #{tpu_custom_call.1} parent=35 // pred_fallthru
          _
        %s322 = sand.u32 %s51, 1
        %s323 = scalar_lea.sflag [#allocation3], %s322
        %s324 = sand.u32 %s51, 1
        %s325 = smul.addr %s324, 16
        %s326 = scalar_lea.vmem [#allocation2], %s325
        %p327 = pneg %p64
        %p328 = pneg %p61
        %s329 = sand.u32 %s29, 1
        %s330 = scalar_lea.sflag [#allocation6], %s329
        %s331 = sand.u32 %s77, 1
        %s332 = smul.addr %s331, 16
        %s333 = scalar_lea.vmem [#allocation5], %s332
        %p334 = pneg %p90
        %p335 = pneg %p87
        %s336 = sand.u32 %s29, 1
        %s337 = scalar_lea.sflag [#allocation6], %s336
        %s338 = sand.u32 %s103, 1
        %s339 = smul.addr %s338, 16
        %s340 = scalar_lea.vmem [#allocation7], %s339
        %p341 = pneg %p116
        %p342 = pneg %p113
        %p343 = scmp.lt.s32.totalorder %s34, 0
        %s344 = scalar_select %p343, %s34, 0
        %s345 = smul.addr %s344, 2
        %s346 = scalar_lea.vmem %s3, %s345
        %p347 = pneg %p142
        %p348 = pneg %p139
        %p349 = pneg %p170
        %p350 = pneg %p167
        %s351 = sand.u32 %s157, 1
        %s352 = scalar_lea.sflag [#allocation4], %s351
        %s353 = sand.u32 %s157, 1
        %s354 = smul.addr %s353, 32
        %s355 = scalar_lea.vmem [#allocation8], %s354
        %p356 = pneg %p198
        %p357 = pneg %p195
        %s358 = sand.u32 %s185, 1
        %s359 = scalar_lea.sflag [#allocation10], %s358
        %s360 = sand.u32 %s185, 1
        %s361 = smul.addr %s360, 32
        %s362 = scalar_lea.vmem [#allocation9], %s361
        %s363 = smul.u32 4, %s33
        %s364 = smul.u32 4, %s33
        %s365 = smul.u32 4, %s33
        %p366 = scmp.lt.s32.totalorder %s34, 0
        %s367 = scalar_select %p366, %s34, 0
        %s368 = smul.addr %s367, 2
        %s369 = scalar_lea.vmem %s3, %s368
        %s370 = smul.u32 4, %s33
        %s371 = smul.u32 4, %s33
        %v375 = vld [vmem:[%s299] sm:$0xf]
        %v376 = vld [vmem:[%s299 + $0x4] sm:$0xf]
        %v377 = vld [vmem:[%s299 + $0x8] sm:$0xf]
        %v378 = vld [vmem:[%s299 + $0xc] sm:$0xf]
        %v379 = vld [vmem:[%s308] sm:$0xf]
        %v380 = vld [vmem:[%s308 + $0x4] sm:$0xf]
        %v381 = vld [vmem:[%s308 + $0x8] sm:$0xf]
        %v382 = vld [vmem:[%s308 + $0xc] sm:$0xf]
        %v383 = vld [vmem:[%s317] sm:$0xf]
        %v384 = vld [vmem:[%s317 + $0x4] sm:$0xf]
        %v385 = vld [vmem:[%s317 + $0x8] sm:$0xf]
        %v386 = vld [vmem:[%s317 + $0xc] sm:$0xf]
        %v387 = vld [vmem:[%s369] sm:$0x3]
        %vm388 = vcmask 523264
        %v390 = vsel %vm388, %v375, 0
        %v393 = vsel %vm388, %v379, 0
        %395 = vmatprep.subr.bf16.mxu0 0
        %396 = vmatpush1.bf16.xpose.msra.mxu0 %v393
        %397 = vmatprep.subr.bf16.mxu0 0
        %398 = vmatpush1.bf16.xpose.msra.mxu0 0
        %399 = vmatprep.subr.bf16.mxu0 0
        %400 = vmatpush1.bf16.xpose.msra.mxu0 0
        %401 = vmatprep.subr.bf16.mxu0 0
        %402 = vmatpush1.bf16.xpose.msra.mxu0 0
        %403 = vmatprep.subr.bf16.mxu0 0
        %404 = vmatpush1.bf16.xpose.msra.mxu0 0
        %405 = vmatprep.subr.bf16.mxu0 0
        %406 = vmatpush1.bf16.xpose.msra.mxu0 0
        %407 = vmatprep.subr.bf16.mxu0 0
        %408 = vmatpush1.bf16.xpose.msra.mxu0 0
        %409 = vmatprep.subr.bf16.mxu0 0
        %410 = vmatpush1.bf16.xpose.msra.mxu0 0
        %411 = vmatprep.subr.bf16.mxu0 0
        %412 = vmatpush1.bf16.xpose.msra.mxu0 0
        %413 = vmatprep.subr.bf16.mxu0 0
        %414 = vmatpush1.bf16.xpose.msra.mxu0 0
        %415 = vmatprep.subr.bf16.mxu0 0
        %416 = vmatpush1.bf16.xpose.msra.mxu0 0
        %417 = vmatprep.subr.bf16.mxu0 0
        %418 = vmatpush1.bf16.xpose.msra.mxu0 0
        %419 = vmatprep.subr.bf16.mxu0 0
        %420 = vmatpush1.bf16.xpose.msra.mxu0 0
        %421 = vmatprep.subr.bf16.mxu0 0
        %422 = vmatpush1.bf16.xpose.msra.mxu0 0
        %423 = vmatprep.subr.bf16.mxu0 0
        %424 = vmatpush1.bf16.xpose.msra.mxu0 0
        %425 = vmatprep.subr.bf16.mxu0 0
        %426 = vmatpush1.bf16.xpose.msra.mxu0 0
        %427 = vmatprep.mubr.bf16.mxu0 0
        %428 = vmatmul.mubr.bf16.gmra.mrb[0].mxu0 %v390
        %v429 = vpop.f32.mrb[0].mxu0
        %v430 = vadd.f32 0.0, %v429
        %v431 = vpop.f32.mrb[0].mxu0
        %v432 = vpop.f32.mrb[0].mxu0
        %v433 = vpop.f32.mrb[0].mxu0
        %434 = vdwg.mxu0
        %v436 = vsel %vm388, %v376, 0
        %v439 = vsel %vm388, %v380, 0
        %441 = vmatprep.subr.bf16.mxu0 0
        %442 = vmatpush1.bf16.xpose.msra.mxu0 %v439
        %443 = vmatprep.subr.bf16.mxu0 0
        %444 = vmatpush1.bf16.xpose.msra.mxu0 0
        %445 = vmatprep.subr.bf16.mxu0 0
        %446 = vmatpush1.bf16.xpose.msra.mxu0 0
        %447 = vmatprep.subr.bf16.mxu0 0
        %448 = vmatpush1.bf16.xpose.msra.mxu0 0
        %449 = vmatprep.subr.bf16.mxu0 0
        %450 = vmatpush1.bf16.xpose.msra.mxu0 0
        %451 = vmatprep.subr.bf16.mxu0 0
        %452 = vmatpush1.bf16.xpose.msra.mxu0 0
        %453 = vmatprep.subr.bf16.mxu0 0
        %454 = vmatpush1.bf16.xpose.msra.mxu0 0
        %455 = vmatprep.subr.bf16.mxu0 0
        %456 = vmatpush1.bf16.xpose.msra.mxu0 0
        %457 = vmatprep.subr.bf16.mxu0 0
        %458 = vmatpush1.bf16.xpose.msra.mxu0 0
        %459 = vmatprep.subr.bf16.mxu0 0
        %460 = vmatpush1.bf16.xpose.msra.mxu0 0
        %461 = vmatprep.subr.bf16.mxu0 0
        %462 = vmatpush1.bf16.xpose.msra.mxu0 0
        %463 = vmatprep.subr.bf16.mxu0 0
        %464 = vmatpush1.bf16.xpose.msra.mxu0 0
        %465 = vmatprep.subr.bf16.mxu0 0
        %466 = vmatpush1.bf16.xpose.msra.mxu0 0
        %467 = vmatprep.subr.bf16.mxu0 0
        %468 = vmatpush1.bf16.xpose.msra.mxu0 0
        %469 = vmatprep.subr.bf16.mxu0 0
        %470 = vmatpush1.bf16.xpose.msra.mxu0 0
        %471 = vmatprep.subr.bf16.mxu0 0
        %472 = vmatpush1.bf16.xpose.msra.mxu0 0
        %473 = vmatprep.mubr.bf16.mxu0 0
        %474 = vmatmul.mubr.bf16.gmra.mrb[0].mxu0 %v436
        %v475 = vpop.f32.mrb[0].mxu0
        %v476 = vadd.f32 0.0, %v475
        %v477 = vpop.f32.mrb[0].mxu0
        %v478 = vpop.f32.mrb[0].mxu0
        %v479 = vpop.f32.mrb[0].mxu0
        %480 = vdwg.mxu0
        %v482 = vsel %vm388, %v377, 0
        %v485 = vsel %vm388, %v381, 0
        %487 = vmatprep.subr.bf16.mxu0 0
        %488 = vmatpush1.bf16.xpose.msra.mxu0 %v485
        %489 = vmatprep.subr.bf16.mxu0 0
        %490 = vmatpush1.bf16.xpose.msra.mxu0 0
        %491 = vmatprep.subr.bf16.mxu0 0
        %492 = vmatpush1.bf16.xpose.msra.mxu0 0
        %493 = vmatprep.subr.bf16.mxu0 0
        %494 = vmatpush1.bf16.xpose.msra.mxu0 0
        %495 = vmatprep.subr.bf16.mxu0 0
        %496 = vmatpush1.bf16.xpose.msra.mxu0 0
        %497 = vmatprep.subr.bf16.mxu0 0
        %498 = vmatpush1.bf16.xpose.msra.mxu0 0
        %499 = vmatprep.subr.bf16.mxu0 0
        %500 = vmatpush1.bf16.xpose.msra.mxu0 0
        %501 = vmatprep.subr.bf16.mxu0 0
        %502 = vmatpush1.bf16.xpose.msra.mxu0 0
        %503 = vmatprep.subr.bf16.mxu0 0
        %504 = vmatpush1.bf16.xpose.msra.mxu0 0
        %505 = vmatprep.subr.bf16.mxu0 0
        %506 = vmatpush1.bf16.xpose.msra.mxu0 0
        %507 = vmatprep.subr.bf16.mxu0 0
        %508 = vmatpush1.bf16.xpose.msra.mxu0 0
        %509 = vmatprep.subr.bf16.mxu0 0
        %510 = vmatpush1.bf16.xpose.msra.mxu0 0
        %511 = vmatprep.subr.bf16.mxu0 0
        %512 = vmatpush1.bf16.xpose.msra.mxu0 0
        %513 = vmatprep.subr.bf16.mxu0 0
        %514 = vmatpush1.bf16.xpose.msra.mxu0 0
        %515 = vmatprep.subr.bf16.mxu0 0
        %516 = vmatpush1.bf16.xpose.msra.mxu0 0
        %517 = vmatprep.subr.bf16.mxu0 0
        %518 = vmatpush1.bf16.xpose.msra.mxu0 0
        %519 = vmatprep.mubr.bf16.mxu0 0
        %520 = vmatmul.mubr.bf16.gmra.mrb[0].mxu0 %v482
        %v521 = vpop.f32.mrb[0].mxu0
        %v522 = vadd.f32 0.0, %v521
        %v523 = vpop.f32.mrb[0].mxu0
        %v524 = vpop.f32.mrb[0].mxu0
        %v525 = vpop.f32.mrb[0].mxu0
        %526 = vdwg.mxu0
        %v528 = vsel %vm388, %v378, 0
        %v531 = vsel %vm388, %v382, 0
        %533 = vmatprep.subr.bf16.mxu0 0
        %534 = vmatpush1.bf16.xpose.msra.mxu0 %v531
        %535 = vmatprep.subr.bf16.mxu0 0
        %536 = vmatpush1.bf16.xpose.msra.mxu0 0
        %537 = vmatprep.subr.bf16.mxu0 0
        %538 = vmatpush1.bf16.xpose.msra.mxu0 0
        %539 = vmatprep.subr.bf16.mxu0 0
        %540 = vmatpush1.bf16.xpose.msra.mxu0 0
        %541 = vmatprep.subr.bf16.mxu0 0
        %542 = vmatpush1.bf16.xpose.msra.mxu0 0
        %543 = vmatprep.subr.bf16.mxu0 0
        %544 = vmatpush1.bf16.xpose.msra.mxu0 0
        %545 = vmatprep.subr.bf16.mxu0 0
        %546 = vmatpush1.bf16.xpose.msra.mxu0 0
        %547 = vmatprep.subr.bf16.mxu0 0
        %548 = vmatpush1.bf16.xpose.msra.mxu0 0
        %549 = vmatprep.subr.bf16.mxu0 0
        %550 = vmatpush1.bf16.xpose.msra.mxu0 0
        %551 = vmatprep.subr.bf16.mxu0 0
        %552 = vmatpush1.bf16.xpose.msra.mxu0 0
        %553 = vmatprep.subr.bf16.mxu0 0
        %554 = vmatpush1.bf16.xpose.msra.mxu0 0
        %555 = vmatprep.subr.bf16.mxu0 0
        %556 = vmatpush1.bf16.xpose.msra.mxu0 0
        %557 = vmatprep.subr.bf16.mxu0 0
        %558 = vmatpush1.bf16.xpose.msra.mxu0 0
        %559 = vmatprep.subr.bf16.mxu0 0
        %560 = vmatpush1.bf16.xpose.msra.mxu0 0
        %561 = vmatprep.subr.bf16.mxu0 0
        %562 = vmatpush1.bf16.xpose.msra.mxu0 0
        %563 = vmatprep.subr.bf16.mxu0 0
        %564 = vmatpush1.bf16.xpose.msra.mxu0 0
        %565 = vmatprep.mubr.bf16.mxu0 0
        %566 = vmatmul.mubr.bf16.gmra.mrb[0].mxu0 %v528
        %v567 = vpop.f32.mrb[0].mxu0
        %v568 = vadd.f32 0.0, %v567
        %v569 = vpop.f32.mrb[0].mxu0
        %v570 = vpop.f32.mrb[0].mxu0
        %v571 = vpop.f32.mrb[0].mxu0
        %572 = vdwg.mxu0
        %v573 = vmul.f32 %v430, 0.125
        %v574 = vmul.f32 %v476, 0.125
        %v575 = vmul.f32 %v522, 0.125
        %v576 = vmul.f32 %v568, 0.125
        %vm577 = vnez %v387
        %v578 = vsel %vm577, 16843009, 0
        %v579 = vunpack.c.0.s8 %v578
        %vm580 = vcmp.ne.s32.totalorder %v579, 0
        %v581 = vsel %vm580, 1, 0
        %vm582 = vcmp.eq.s32.totalorder %v581, 1
        %v583 = vsel %vm582, -1e+09, %v573
        %v584 = vsel %vm582, -1e+09, %v574
        %v585 = vsel %vm582, -1e+09, %v575
        %v586 = vsel %vm582, -1e+09, %v576
        %vm587 = vcmask 64512
        %v588 = vsel %vm587, %v583, -inf
        %589 = vmax.xlane.f32.xlu0 %v588
        %v590 = vpop.xlane.xlu0 %589
        %v591 = vsel %vm587, %v584, -inf
        %592 = vmax.xlane.f32.xlu0 %v591
        %v593 = vpop.xlane.xlu0 %592
        %v594 = vsel %vm587, %v585, -inf
        %595 = vmax.xlane.f32.xlu0 %v594
        %v596 = vpop.xlane.xlu0 %595
        %v597 = vsel %vm587, %v586, -inf
        %598 = vmax.xlane.f32.xlu0 %v597
        %v599 = vpop.xlane.xlu0 %598
        %v600 = vsub.f32 %v583, %v590
        %v601 = vsub.f32 %v584, %v593
        %v602 = vsub.f32 %v585, %v596
        %v603 = vsub.f32 %v586, %v599
        %v604 = vmul.f32 %v600, 1.442695
        %v605 = vpow.pop %v604
        %v606 = vmul.f32 %v601, 1.442695
        %v607 = vpow.pop %v606
        %v608 = vmul.f32 %v602, 1.442695
        %v609 = vpow.pop %v608
        %v610 = vmul.f32 %v603, 1.442695
        %v611 = vpow.pop %v610
        %v612 = vsel %vm587, %v605, 0.0
        %613 = vadd.xlane.f32.xlu0 %v612
        %v614 = vpop.xlane.xlu0 %613
        %v615 = vsel %vm587, %v607, 0.0
        %616 = vadd.xlane.f32.xlu0 %v615
        %v617 = vpop.xlane.xlu0 %616
        %v618 = vsel %vm587, %v609, 0.0
        %619 = vadd.xlane.f32.xlu0 %v618
        %v620 = vpop.xlane.xlu0 %619
        %v621 = vsel %vm587, %v611, 0.0
        %622 = vadd.xlane.f32.xlu0 %v621
        %v623 = vpop.xlane.xlu0 %622
        %v624 = vrcp.pop %v614
        %v625 = vrcp.pop %v617
        %v626 = vrcp.pop %v620
        %v627 = vrcp.pop %v623
        %v628 = vmul.f32 %v605, %v624
        %v629 = vmul.f32 %v607, %v625
        %v630 = vmul.f32 %v609, %v626
        %v631 = vmul.f32 %v611, %v627
        %632 = vst.msk [vmem:[%s362] sm:$0xff] %vm587, %v628
        %633 = vst.msk [vmem:[%s362 + $0x8] sm:$0xff] %vm587, %v629
        %634 = vst.msk [vmem:[%s362 + $0x10] sm:$0xff] %vm587, %v630
        %635 = vst.msk [vmem:[%s362 + $0x18] sm:$0xff] %vm587, %v631
        %v636 = vpack.c.bf16 %v628, %v628
        %v637 = vpack.c.bf16 %v629, %v629
        %v638 = vpack.c.bf16 %v630, %v630
        %v639 = vpack.c.bf16 %v631, %v631
        %v641 = vsel %vm587, %v636, 0
        %vm643 = vcmask 1043456
        %v645 = vsel %vm643, %v383, 0
        %647 = vmatprep.subr.bf16.mxu0 0
        %648 = vmatpush1.bf16.msra.mxu0 %v645
        %649 = vmatprep.subr.bf16.mxu0 0
        %650 = vmatpush1.bf16.msra.mxu0 0
        %651 = vmatprep.subr.bf16.mxu0 0
        %652 = vmatpush1.bf16.msra.mxu0 0
        %653 = vmatprep.subr.bf16.mxu0 0
        %654 = vmatpush1.bf16.msra.mxu0 0
        %655 = vmatprep.subr.bf16.mxu0 0
        %656 = vmatpush1.bf16.msra.mxu0 0
        %657 = vmatprep.subr.bf16.mxu0 0
        %658 = vmatpush1.bf16.msra.mxu0 0
        %659 = vmatprep.subr.bf16.mxu0 0
        %660 = vmatpush1.bf16.msra.mxu0 0
        %661 = vmatprep.subr.bf16.mxu0 0
        %662 = vmatpush1.bf16.msra.mxu0 0
        %663 = vmatprep.subr.bf16.mxu0 0
        %664 = vmatpush1.bf16.msra.mxu0 0
        %665 = vmatprep.subr.bf16.mxu0 0
        %666 = vmatpush1.bf16.msra.mxu0 0
        %667 = vmatprep.subr.bf16.mxu0 0
        %668 = vmatpush1.bf16.msra.mxu0 0
        %669 = vmatprep.subr.bf16.mxu0 0
        %670 = vmatpush1.bf16.msra.mxu0 0
        %671 = vmatprep.subr.bf16.mxu0 0
        %672 = vmatpush1.bf16.msra.mxu0 0
        %673 = vmatprep.subr.bf16.mxu0 0
        %674 = vmatpush1.bf16.msra.mxu0 0
        %675 = vmatprep.subr.bf16.mxu0 0
        %676 = vmatpush1.bf16.msra.mxu0 0
        %677 = vmatprep.subr.bf16.mxu0 0
        %678 = vmatpush1.bf16.msra.mxu0 0
        %679 = vmatprep.mubr.bf16.mxu0 0
        %680 = vmatmul.mubr.bf16.gmra.mrb[0].mxu0 %v641
        %v681 = vpop.f32.mrb[0].mxu0
        %v682 = vadd.f32 0.0, %v681
        %v683 = vpop.f32.mrb[0].mxu0
        %v684 = vpop.f32.mrb[0].mxu0
        %v685 = vpop.f32.mrb[0].mxu0
        %686 = vdwg.mxu0
        %v688 = vsel %vm587, %v637, 0
        %v691 = vsel %vm643, %v384, 0
        %693 = vmatprep.subr.bf16.mxu0 0
        %694 = vmatpush1.bf16.msra.mxu0 %v691
        %695 = vmatprep.subr.bf16.mxu0 0
        %696 = vmatpush1.bf16.msra.mxu0 0
        %697 = vmatprep.subr.bf16.mxu0 0
        %698 = vmatpush1.bf16.msra.mxu0 0
        %699 = vmatprep.subr.bf16.mxu0 0
        %700 = vmatpush1.bf16.msra.mxu0 0
        %701 = vmatprep.subr.bf16.mxu0 0
        %702 = vmatpush1.bf16.msra.mxu0 0
        %703 = vmatprep.subr.bf16.mxu0 0
        %704 = vmatpush1.bf16.msra.mxu0 0
        %705 = vmatprep.subr.bf16.mxu0 0
        %706 = vmatpush1.bf16.msra.mxu0 0
        %707 = vmatprep.subr.bf16.mxu0 0
        %708 = vmatpush1.bf16.msra.mxu0 0
        %709 = vmatprep.subr.bf16.mxu0 0
        %710 = vmatpush1.bf16.msra.mxu0 0
        %711 = vmatprep.subr.bf16.mxu0 0
        %712 = vmatpush1.bf16.msra.mxu0 0
        %713 = vmatprep.subr.bf16.mxu0 0
        %714 = vmatpush1.bf16.msra.mxu0 0
        %715 = vmatprep.subr.bf16.mxu0 0
        %716 = vmatpush1.bf16.msra.mxu0 0
        %717 = vmatprep.subr.bf16.mxu0 0
        %718 = vmatpush1.bf16.msra.mxu0 0
        %719 = vmatprep.subr.bf16.mxu0 0
        %720 = vmatpush1.bf16.msra.mxu0 0
        %721 = vmatprep.subr.bf16.mxu0 0
        %722 = vmatpush1.bf16.msra.mxu0 0
        %723 = vmatprep.subr.bf16.mxu0 0
        %724 = vmatpush1.bf16.msra.mxu0 0
        %725 = vmatprep.mubr.bf16.mxu0 0
        %726 = vmatmul.mubr.bf16.gmra.mrb[0].mxu0 %v688
        %v727 = vpop.f32.mrb[0].mxu0
        %v728 = vadd.f32 0.0, %v727
        %v729 = vpop.f32.mrb[0].mxu0
        %v730 = vpop.f32.mrb[0].mxu0
        %v731 = vpop.f32.mrb[0].mxu0
        %732 = vdwg.mxu0
        %v734 = vsel %vm587, %v638, 0
        %v737 = vsel %vm643, %v385, 0
        %739 = vmatprep.subr.bf16.mxu0 0
        %740 = vmatpush1.bf16.msra.mxu0 %v737
        %741 = vmatprep.subr.bf16.mxu0 0
        %742 = vmatpush1.bf16.msra.mxu0 0
        %743 = vmatprep.subr.bf16.mxu0 0
        %744 = vmatpush1.bf16.msra.mxu0 0
        %745 = vmatprep.subr.bf16.mxu0 0
        %746 = vmatpush1.bf16.msra.mxu0 0
        %747 = vmatprep.subr.bf16.mxu0 0
        %748 = vmatpush1.bf16.msra.mxu0 0
        %749 = vmatprep.subr.bf16.mxu0 0
        %750 = vmatpush1.bf16.msra.mxu0 0
        %751 = vmatprep.subr.bf16.mxu0 0
        %752 = vmatpush1.bf16.msra.mxu0 0
        %753 = vmatprep.subr.bf16.mxu0 0
        %754 = vmatpush1.bf16.msra.mxu0 0
        %755 = vmatprep.subr.bf16.mxu0 0
        %756 = vmatpush1.bf16.msra.mxu0 0
        %757 = vmatprep.subr.bf16.mxu0 0
        %758 = vmatpush1.bf16.msra.mxu0 0
        %759 = vmatprep.subr.bf16.mxu0 0
        %760 = vmatpush1.bf16.msra.mxu0 0
        %761 = vmatprep.subr.bf16.mxu0 0
        %762 = vmatpush1.bf16.msra.mxu0 0
        %763 = vmatprep.subr.bf16.mxu0 0
        %764 = vmatpush1.bf16.msra.mxu0 0
        %765 = vmatprep.subr.bf16.mxu0 0
        %766 = vmatpush1.bf16.msra.mxu0 0
        %767 = vmatprep.subr.bf16.mxu0 0
        %768 = vmatpush1.bf16.msra.mxu0 0
        %769 = vmatprep.subr.bf16.mxu0 0
        %770 = vmatpush1.bf16.msra.mxu0 0
        %771 = vmatprep.mubr.bf16.mxu0 0
        %772 = vmatmul.mubr.bf16.gmra.mrb[0].mxu0 %v734
        %v773 = vpop.f32.mrb[0].mxu0
        %v774 = vadd.f32 0.0, %v773
        %v775 = vpop.f32.mrb[0].mxu0
        %v776 = vpop.f32.mrb[0].mxu0
        %v777 = vpop.f32.mrb[0].mxu0
        %778 = vdwg.mxu0
        %v780 = vsel %vm587, %v639, 0
        %v783 = vsel %vm643, %v386, 0
        %785 = vmatprep.subr.bf16.mxu0 0
        %786 = vmatpush1.bf16.msra.mxu0 %v783
        %787 = vmatprep.subr.bf16.mxu0 0
        %788 = vmatpush1.bf16.msra.mxu0 0
        %789 = vmatprep.subr.bf16.mxu0 0
        %790 = vmatpush1.bf16.msra.mxu0 0
        %791 = vmatprep.subr.bf16.mxu0 0
        %792 = vmatpush1.bf16.msra.mxu0 0
        %793 = vmatprep.subr.bf16.mxu0 0
        %794 = vmatpush1.bf16.msra.mxu0 0
        %795 = vmatprep.subr.bf16.mxu0 0
        %796 = vmatpush1.bf16.msra.mxu0 0
        %797 = vmatprep.subr.bf16.mxu0 0
        %798 = vmatpush1.bf16.msra.mxu0 0
        %799 = vmatprep.subr.bf16.mxu0 0
        %800 = vmatpush1.bf16.msra.mxu0 0
        %801 = vmatprep.subr.bf16.mxu0 0
        %802 = vmatpush1.bf16.msra.mxu0 0
        %803 = vmatprep.subr.bf16.mxu0 0
        %804 = vmatpush1.bf16.msra.mxu0 0
        %805 = vmatprep.subr.bf16.mxu0 0
        %806 = vmatpush1.bf16.msra.mxu0 0
        %807 = vmatprep.subr.bf16.mxu0 0
        %808 = vmatpush1.bf16.msra.mxu0 0
        %809 = vmatprep.subr.bf16.mxu0 0
        %810 = vmatpush1.bf16.msra.mxu0 0
        %811 = vmatprep.subr.bf16.mxu0 0
        %812 = vmatpush1.bf16.msra.mxu0 0
        %813 = vmatprep.subr.bf16.mxu0 0
        %814 = vmatpush1.bf16.msra.mxu0 0
        %815 = vmatprep.subr.bf16.mxu0 0
        %816 = vmatpush1.bf16.msra.mxu0 0
        %817 = vmatprep.mubr.bf16.mxu0 0
        %818 = vmatmul.mubr.bf16.gmra.mrb[0].mxu0 %v780
        %v819 = vpop.f32.mrb[0].mxu0
        %v820 = vadd.f32 0.0, %v819
        %v821 = vpop.f32.mrb[0].mxu0
        %v822 = vpop.f32.mrb[0].mxu0
        %v823 = vpop.f32.mrb[0].mxu0
        %824 = vdwg.mxu0
        %825 = vst.msk [vmem:[%s355] sm:$0xff] %vm388, %v682
        %826 = vst.msk [vmem:[%s355 + $0x8] sm:$0xff] %vm388, %v728
        %827 = vst.msk [vmem:[%s355 + $0x10] sm:$0xff] %vm388, %v774
        %828 = vst.msk [vmem:[%s355 + $0x18] sm:$0xff] %vm388, %v820
        %s829 = sand.u32 %s157, 1
        %s830 = scalar_lea.sflag [#allocation4], %s829
        %s831 = sand.u32 %s157, 1
        %s832 = smul.addr %s831, 32
        %s833 = scalar_lea.vmem [#allocation8], %s832
        %s834 = sand.u32 %s185, 1
        %s835 = scalar_lea.sflag [#allocation10], %s834
        %s836 = sand.u32 %s185, 1
        %s837 = smul.addr %s836, 32
        %s838 = scalar_lea.vmem [#allocation9], %s837
        // Predicated region
        $region49: #{tpu_custom_call.1} parent=35 // pred_check
          %p839 = pneg %p167
        $region50: #{tpu_custom_call.1} parent=35 // pred_check_branch
          %841 = sbr.rel (%p839) target = $region52
        $region51: #{tpu_custom_call.1} parent=35 // pred_region
          %s842 = smul.u32 4, %s33
          %s844 = ssub.s32 512, 512
          %845 = vsyncadd %s830, %s844
          %s846 = sadd.s32 %s34, %s842
          %s847 = smul.addr %s846, 128
          %s848 = scalar_lea.hbm %s4, %s847
          %s849 = sshll.u32 %s833, 4
          %s850 = int_to_ptr.vmem [resolvable:$true] %s849
          %855 = dma.vmem_to_hbm [thread:$0]  %s850, 512, %s848, %s830, 128, 128, 8
        $region52: #{tpu_custom_call.1} parent=35 // pred_fallthru
          _
        // Predicated region
        $region53: #{tpu_custom_call.1} parent=35 // pred_check
          %p856 = pneg %p195
        $region54: #{tpu_custom_call.1} parent=35 // pred_check_branch
          %858 = sbr.rel (%p856) target = $region56
        $region55: #{tpu_custom_call.1} parent=35 // pred_region
          %s859 = smul.u32 4, %s33
          %s861 = ssub.s32 512, 512
          %862 = vsyncadd %s835, %s861
          %s863 = sadd.s32 %s34, %s859
          %s864 = smul.addr %s863, 128
          %s865 = scalar_lea.hbm %s5, %s864
          %s866 = sshll.u32 %s838, 4
          %s867 = int_to_ptr.vmem [resolvable:$true] %s866
          %872 = dma.vmem_to_hbm [thread:$0]  %s867, 512, %s865, %s835, 128, 128, 8
        $region56: #{tpu_custom_call.1} parent=35 // pred_fallthru
          _
      $region36: #{tpu_custom_call.1} parent=5 // pred_fallthru
        _
      %p873 = scmp.le.s32.totalorder 2, %s24
      // Predicated region
      $region57: #{tpu_custom_call.1} parent=5 // pred_check
        %p874 = pneg %p873
      $region58: #{tpu_custom_call.1} parent=5 // pred_check_branch
        %876 = sbr.rel (%p874) target = $region60
      $region59: #{tpu_custom_call.1} parent=5 // pred_region
        %s877 = ssub.s32 %s24, 2
        // Predicated region
        $region61: #{tpu_custom_call.1} parent=59 // pred_check
          %p878 = pneg %p173
        $region62: #{tpu_custom_call.1} parent=59 // pred_check_branch
          %880 = sbr.rel (%p878) target = $region64
        $region63: #{tpu_custom_call.1} parent=59 // pred_region
          %s881 = sand.u32 %s158, 1
          %s882 = scalar_lea.sflag [#allocation4], %s881
          %s883 = sand.u32 %s158, 1
          %s884 = smul.addr %s883, 32
          %s885 = scalar_lea.vmem [#allocation8], %s884
          %886 = dma.done %s882, 512
        $region64: #{tpu_custom_call.1} parent=59 // pred_fallthru
          _
        // Predicated region
        $region65: #{tpu_custom_call.1} parent=59 // pred_check
          %p887 = pneg %p201
        $region66: #{tpu_custom_call.1} parent=59 // pred_check_branch
          %889 = sbr.rel (%p887) target = $region68
        $region67: #{tpu_custom_call.1} parent=59 // pred_region
          %s890 = sand.u32 %s186, 1
          %s891 = scalar_lea.sflag [#allocation10], %s890
          %s892 = sand.u32 %s186, 1
          %s893 = smul.addr %s892, 32
          %s894 = scalar_lea.vmem [#allocation9], %s893
          %895 = dma.done %s891, 512
        $region68: #{tpu_custom_call.1} parent=59 // pred_fallthru
          _
      $region60: #{tpu_custom_call.1} parent=5 // pred_fallthru
        _
    $region6: #{tpu_custom_call.1} parent=1 // loop_footer
      %s28 = sadd.s32 1, %s24
    $region7: #{tpu_custom_call.1} parent=1 // loop_footer_branch
      %23 = sbr.rel target = $region3
    $region8: #{tpu_custom_call.1} parent=1 // loop_exit
      _
    %896 = vsyncpa [#allocation3], 1
    %s897 = scalar_lea.sflag [#allocation3], 1
    %898 = vsyncpa %s897, 1
    %899 = vsyncpa [#allocation6], 1
    %s900 = scalar_lea.sflag [#allocation6], 1
    %901 = vsyncpa %s900, 1
    %902 = vsyncpa [#allocation4], 1
    %s903 = scalar_lea.sflag [#allocation4], 1
    %904 = vsyncpa %s903, 1
    %905 = vsyncpa [#allocation10], 1
    %s906 = scalar_lea.sflag [#allocation10], 1
    %907 = vsyncpa %s906, 1

</llo_original>
